<compile_context>
chip_gen: v7x
topology: tpu7x:2x2x1
jax: 0.10.0
libtpu: 0.0.40
codegen_flags: <defaults>
</compile_context>

<pallas_src>
import functools

import jax
import jax.numpy as jnp
from jax import lax
from jax.experimental import pallas as pl
from jax.experimental.pallas import tpu as pltpu


def _round_up(x, m):
    return (x + m - 1) // m * m


def _vmem_limit(needed_bytes):
    """Request ~what we need (+ slack), capped at ~85% of physical VMEM."""
    try:
        cap = pltpu.get_tpu_info().vmem_capacity_bytes
    except Exception:  # pragma: no cover - conservative fallback (v7x size)
        cap = 64 * 1024 * 1024
    want = max(32 * 1024 * 1024, int(needed_bytes) + (4 << 20))
    return int(min(int(0.85 * cap), want))


# --------------------------------------------------------------------------
# Kernel 1: h = X @ W' + b'   (BN scale folded into W' and b')
# --------------------------------------------------------------------------
def _linear_kernel(x_ref, w_ref, b_ref, h_ref):
    # x_ref: (TN, D_in)   w_ref: (D_in, D_pad)   b_ref: (1, D_pad) f32
    # h_ref: (TN, D_pad)  stored in the matmul dtype (bf16 by default)
    h = jnp.dot(x_ref[...], w_ref[...], preferred_element_type=jnp.float32)
    h_ref[...] = (h + b_ref[...]).astype(h_ref.dtype)


# --------------------------------------------------------------------------
# Kernel 2: y = A @ h, then BN shift + ReLU (scale already folded into W/b)
# --------------------------------------------------------------------------
def _aggregate_kernel(a_ref, h_ref, s_ref, o_ref, acc_ref, *,
                      n_nodes, k_tile, mask_tail):
    # a_ref: (TM, TK)   h_ref: (TK, D_pad)   s_ref: (1, D_pad) f32
    # o_ref: (TM, D_pad)                     acc_ref: (TM, D_pad) f32 scratch
    k = pl.program_id(2)

    @pl.when(k == 0)
    def _():
        acc_ref[...] = jnp.zeros_like(acc_ref)

    a = a_ref[...]
    h = h_ref[...]
    if mask_tail:
        # Last K tile reads past N on both A's lanes and h's rows (edge blocks
        # contain unspecified data, possibly NaN). Zero both sides so garbage
        # never reaches the accumulator. Traced only when N % TK != 0.
        base = k * k_tile
        col = base + lax.broadcasted_iota(jnp.int32, a.shape, 1)
        a = jnp.where(col < n_nodes, a, jnp.zeros_like(a))
        row = base + lax.broadcasted_iota(jnp.int32, h.shape, 0)
        h = jnp.where(row < n_nodes, h, jnp.zeros_like(h))

    acc_ref[...] += jnp.dot(a, h, preferred_element_type=jnp.float32)

    @pl.when(k == pl.num_programs(2) - 1)
    def _():
        # BatchNorm shift + ReLU in f32; dropout is identity in eval mode.
        o_ref[...] = jnp.maximum(acc_ref[...] + s_ref[...], 0.0).astype(o_ref.dtype)


# --------------------------------------------------------------------------
# Wrapper
# --------------------------------------------------------------------------
def gconv_forward(X, A, W, b, gamma, beta, running_mean, running_var,
                  eps=1e-5, row_tile=512, k_tile=512,
                  matmul_dtype=jnp.bfloat16):
    """Fused GConv forward. Returns (out, A) like the PyTorch module.

    X: [B, N, D_in], A: [B, N, N], W: [D_in, D_out] (nn.Linear weight pre-transposed).
    matmul_dtype: dtype for the MXU operands and the stored h intermediate
      (default bf16; accumulation is always f32). Pass A/X already in bf16
      upstream to avoid the one-time cast pass over A.
    """
    B, N, D_in = X.shape
    D_out = W.shape[1]
    mm_dtype = jnp.dtype(matmul_dtype) if matmul_dtype is not None else jnp.dtype(jnp.float32)
    out_dtype = X.dtype

    # Fold BatchNorm (eval / running stats) into the linear layer; the
    # per-channel scale commutes through A @ (.), only the shift remains.
    inv_std = 1.0 / jnp.sqrt(running_var.astype(jnp.float32) + eps)
    scale = gamma.astype(jnp.float32) * inv_std                       # (D_out,)
    shift = beta.astype(jnp.float32) - running_mean.astype(jnp.float32) * scale
    W_f = W.astype(jnp.float32) * scale[None, :]                      # (D_in, D_out)
    b_f = b.astype(jnp.float32) * scale                               # (D_out,)

    # Lane-dense channel padding. Only the tiny per-channel arrays are padded;
    # A and X are NOT copied / zero-padded in HBM.
    D_pad = _round_up(D_out, 128)
    Wp = jnp.zeros((D_in, D_pad), mm_dtype).at[:, :D_out].set(W_f.astype(mm_dtype))
    bias = jnp.zeros((1, D_pad), jnp.float32).at[0, :D_out].set(b_f)
    shiftp = jnp.zeros((1, D_pad), jnp.float32).at[0, :D_out].set(shift)

    Xc = X.astype(mm_dtype)
    Ac = A.astype(mm_dtype)

    # Tile sizes. Row tiles need only be a multiple of 8 (partial edge tiles
    # are masked on write); the K tile must be a multiple of 128 unless it
    # spans the full contraction.
    assert row_tile % 8 == 0
    TM = min(row_tile, _round_up(N, 8))
    n_row = pl.cdiv(N, TM)
    if N <= k_tile:
        TK = N
    else:
        assert k_tile % 128 == 0
        TK = k_tile
    n_k = pl.cdiv(N, TK)
    mask_tail = (N % TK) != 0

    x_item = Xc.dtype.itemsize
    a_item = Ac.dtype.itemsize
    h_item = mm_dtype.itemsize
    o_item = jnp.dtype(out_dtype).itemsize

    # ---- Kernel 1: h = X @ W' + b'  (row-tiled, fully parallel grid) ----
    vmem1 = 2 * (TM * D_in * x_item + D_in * D_pad * h_item
                 + 8 * D_pad * 4 + TM * D_pad * h_item)
    cost1 = pl.CostEstimate(
        flops=int(2 * B * N * D_in * D_pad),
        transcendentals=0,
        bytes_accessed=int(Xc.size * x_item + Wp.size * h_item
                           + bias.size * 4 + B * N * D_pad * h_item),
    )
    h = pl.pallas_call(
        _linear_kernel,
        out_shape=jax.ShapeDtypeStruct((B, N, D_pad), mm_dtype),
        grid_spec=pltpu.PrefetchScalarGridSpec(
            num_scalar_prefetch=0,
            grid=(B, n_row),
            in_specs=[
                pl.BlockSpec((pl.Squeezed(), TM, D_in), lambda bi, ri: (bi, ri, 0)),  # X rows
                pl.BlockSpec((D_in, D_pad), lambda bi, ri: (0, 0)),                   # W (invariant)
                pl.BlockSpec((1, D_pad), lambda bi, ri: (0, 0)),                      # bias (invariant)
            ],
            out_specs=pl.BlockSpec((pl.Squeezed(), TM, D_pad), lambda bi, ri: (bi, ri, 0)),
        ),
        compiler_params=pltpu.CompilerParams(
            dimension_semantics=("parallel", "parallel"),
            vmem_limit_bytes=_vmem_limit(vmem1),
        ),
        cost_estimate=cost1,
    )(Xc, Wp, bias)

    # ---- Kernel 2: y = A @ h (+ shift, ReLU), K-tiled contraction ----
    vmem2 = (2 * (TM * TK * a_item + TK * D_pad * h_item
                  + 8 * D_pad * 4 + TM * D_pad * o_item)
             + TM * D_pad * 4)  # f32 accumulator scratch
    cost2 = pl.CostEstimate(
        flops=int(2 * B * N * N * D_pad),
        transcendentals=0,
        bytes_accessed=int(Ac.size * a_item
                           + n_row * B * N * D_pad * h_item   # h re-read per row tile
                           + shiftp.size * 4
                           + B * N * D_pad * o_item),
    )
    agg = functools.partial(_aggregate_kernel, n_nodes=N, k_tile=TK, mask_tail=mask_tail)
    out = pl.pallas_call(
        agg,
        out_shape=jax.ShapeDtypeStruct((B, N, D_pad), out_dtype),
        grid_spec=pltpu.PrefetchScalarGridSpec(
            num_scalar_prefetch=0,
            grid=(B, n_row, n_k),
            in_specs=[
                pl.BlockSpec((pl.Squeezed(), TM, TK), lambda bi, ri, ki: (bi, ri, ki)),    # A tile
                pl.BlockSpec((pl.Squeezed(), TK, D_pad), lambda bi, ri, ki: (bi, ki, 0)),  # h tile
                pl.BlockSpec((1, D_pad), lambda bi, ri, ki: (0, 0)),                       # shift
            ],
            out_specs=pl.BlockSpec((pl.Squeezed(), TM, D_pad), lambda bi, ri, ki: (bi, ri, 0)),
            scratch_shapes=[pltpu.VMEM((TM, D_pad), jnp.float32)],
        ),
        compiler_params=pltpu.CompilerParams(
            dimension_semantics=("parallel", "parallel", "arbitrary"),
            vmem_limit_bytes=_vmem_limit(vmem2),
        ),
        cost_estimate=cost2,
    )(Ac, h, shiftp)

    # Keep API parity with the PyTorch module; consumers that accept the padded
    # lane-dense layout can skip this slice to avoid an extra copy.
    if D_pad != D_out:
        out = out[:, :, :D_out]
    return out, A


# --------------------------------------------------------------------------
# Self test
# --------------------------------------------------------------------------
def _reference(X, A, W, b, gamma, beta, mean, var, eps=1e-5, mm_dtype=None):
    """Pure-JAX reference with the same BN folding / dtype rounding."""
    inv_std = 1.0 / jnp.sqrt(var + eps)
    scale = gamma * inv_std
    shift = beta - mean * scale
    Wf = W * scale[None, :]
    bf = b * scale
    if mm_dtype is not None:
        Wf = Wf.astype(mm_dtype).astype(jnp.float32)
        Xc = X.astype(mm_dtype).astype(jnp.float32)
        Ac = A.astype(mm_dtype).astype(jnp.float32)
    else:
        Xc, Ac = X, A
    h = jnp.einsum("bnd,df->bnf", Xc, Wf,
                   precision=jax.lax.Precision.HIGHEST) + bf
    if mm_dtype is not None:
        h = h.astype(mm_dtype).astype(jnp.float32)
    y = jnp.einsum("bij,bjf->bif", Ac, h,
                   precision=jax.lax.Precision.HIGHEST)
    return jnp.maximum(y + shift, 0.0)


def _make_inputs(key, B, N, D_in, D_out):
    k1, k2, k3, k4, k5, k6, k7, k8 = jax.random.split(key, 8)
    X = jax.random.normal(k1, (B, N, D_in), dtype=jnp.float32)
    A = jax.random.uniform(k2, (B, N, N), dtype=jnp.float32)
    A = (A + jnp.swapaxes(A, -1, -2)) * 0.5
    W = jax.random.normal(k3, (D_in, D_out), dtype=jnp.float32) / jnp.sqrt(D_in)
    b = jax.random.normal(k4, (D_out,), dtype=jnp.float32) * 0.1
    gamma = jax.random.uniform(k5, (D_out,), jnp.float32, 0.5, 1.5)
    beta = jax.random.normal(k6, (D_out,), dtype=jnp.float32) * 0.1
    mean = jax.random.normal(k7, (D_out,), dtype=jnp.float32) * 0.1
    var = jax.random.uniform(k8, (D_out,), jnp.float32, 0.5, 1.5)
    return X, A, W, b, gamma, beta, mean, var


if __name__ == "__main__":
    key = jax.random.PRNGKey(0)
    k_small, k_big = jax.random.split(key)

    # --- Test 1: small shapes, f32 path, tight check ---
    B, N, D_in, D_out = 2, 16, 32, 32
    args = _make_inputs(k_small, B, N, D_in, D_out)
    out32, A_out = gconv_forward(*args, matmul_dtype=jnp.float32)
    out32 = jax.block_until_ready(out32)
    ref32 = _reference(*args, mm_dtype=None)
    assert out32.shape == (B, N, D_out)
    assert jnp.allclose(out32, ref32, atol=1e-4, rtol=1e-4), "f32 path mismatch"
    assert A_out.shape == args[1].shape

    # --- Test 2: small shapes, default bf16 path, loose check ---
    outbf, _ = gconv_forward(*args)  # matmul_dtype defaults to bf16
    outbf = jax.block_until_ready(outbf)
    refbf = _reference(*args, mm_dtype=jnp.bfloat16)
    assert jnp.allclose(outbf, refbf, atol=5e-2, rtol=5e-2), "bf16 path mismatch"

    # --- Test 3: larger graph exercising K tiling, tail masking, partial tiles ---
    B2, N2 = 1, 200
    args2 = _make_inputs(k_big, B2, N2, D_in, D_out)
    out2, _ = gconv_forward(*args2, row_tile=64, k_tile=128)
    out2 = jax.block_until_ready(out2)
    ref2 = _reference(*args2, mm_dtype=jnp.bfloat16)
    assert out2.shape == (B2, N2, D_out)
    assert jnp.allclose(out2, ref2, atol=1e-1, rtol=5e-2), "tiled bf16 path mismatch"

    print("KERNEL_OK")
</pallas_src>

<mosaic_0001>
module attributes {stable_mosaic.version = 11 : i64} {
  func.func @_linear_kernel(%arg0: i32, %arg1: i32, %arg2: memref<1x16x32xf32, #tpu.memory_space<vmem>>, %arg3: memref<32x128xf32, #tpu.memory_space<vmem>>, %arg4: memref<1x128xf32, #tpu.memory_space<vmem>>, %arg5: memref<1x16x128xf32, #tpu.memory_space<vmem>>) attributes {dimension_semantics = [#tpu.dimension_semantics<parallel>, #tpu.dimension_semantics<parallel>], iteration_bounds = array<i64: 2, 1>, scalar_prefetch = 0 : i64, scratch_operands = 0 : i64, tpu.core_type = #tpu.core_type<tc>, window_params = [{transform_indices = @transform_0, window_bounds = array<i64: 1, 16, 32>}, {pipeline_mode = #tpu.pipeline_mode<synchronous>, transform_indices = @transform_1, window_bounds = array<i64: 32, 128>}, {pipeline_mode = #tpu.pipeline_mode<synchronous>, transform_indices = @transform_2, window_bounds = array<i64: 1, 128>}, {transform_indices = @transform_3, window_bounds = array<i64: 1, 16, 128>}]} {
    %c0 = arith.constant 0 : index
    %c0_0 = arith.constant 0 : index
    %c0_1 = arith.constant 0 : index
    %0 = vector.load %arg2[%c0, %c0_0, %c0_1] : memref<1x16x32xf32, #tpu.memory_space<vmem>>, vector<1x16x32xf32>
    %1 = vector.shape_cast %0 : vector<1x16x32xf32> to vector<16x32xf32>
    %c0_2 = arith.constant 0 : index
    %c0_3 = arith.constant 0 : index
    %2 = vector.load %arg3[%c0_2, %c0_3] : memref<32x128xf32, #tpu.memory_space<vmem>>, vector<32x128xf32>
    %cst = arith.constant dense<0.000000e+00> : vector<16x128xf32>
    %3 = tpu.matmul %1, %2, %cst {dimension_numbers = #tpu.dot_dimension_numbers<[1], [0], [0], [1], [0, 0, 1, 1], [], []>} : vector<16x32xf32>, vector<32x128xf32>, vector<16x128xf32> -> vector<16x128xf32>
    %c0_4 = arith.constant 0 : index
    %c0_5 = arith.constant 0 : index
    %4 = vector.load %arg4[%c0_4, %c0_5] : memref<1x128xf32, #tpu.memory_space<vmem>>, vector<1x128xf32>
    %5 = vector.broadcast %4 : vector<1x128xf32> to vector<16x128xf32>
    %6 = arith.addf %3, %5 : vector<16x128xf32>
    %c0_6 = arith.constant 0 : index
    %c0_7 = arith.constant 0 : index
    %c0_8 = arith.constant 0 : index
    %7 = vector.load %arg5[%c0_6, %c0_7, %c0_8] : memref<1x16x128xf32, #tpu.memory_space<vmem>>, vector<1x16x128xf32>
    %8 = vector.shape_cast %7 : vector<1x16x128xf32> to vector<16x128xf32>
    %9 = vector.shape_cast %6 : vector<16x128xf32> to vector<1x16x128xf32>
    tpu.vector_store %arg5[%c0_6, %c0_7, %c0_8], %9 {strides = array<i32>} : memref<1x16x128xf32, #tpu.memory_space<vmem>>, vector<1x16x128xf32>,
    return
  }
  func.func @transform_0(%arg0: i32, %arg1: i32) -> (i32, i32, i32) {
    %c0_i32 = arith.constant 0 : i32
    %c0_i32_0 = arith.constant 0 : i32
    return %arg0, %arg1, %c0_i32 : i32, i32, i32
  }
  func.func @transform_1(%arg0: i32, %arg1: i32) -> (i32, i32) {
    %c0_i32 = arith.constant 0 : i32
    %c0_i32_0 = arith.constant 0 : i32
    %c0_i32_1 = arith.constant 0 : i32
    return %c0_i32, %c0_i32_0 : i32, i32
  }
  func.func @transform_2(%arg0: i32, %arg1: i32) -> (i32, i32) {
    %c0_i32 = arith.constant 0 : i32
    %c0_i32_0 = arith.constant 0 : i32
    %c0_i32_1 = arith.constant 0 : i32
    return %c0_i32, %c0_i32_0 : i32, i32
  }
  func.func @transform_3(%arg0: i32, %arg1: i32) -> (i32, i32, i32) {
    %c0_i32 = arith.constant 0 : i32
    %c0_i32_0 = arith.constant 0 : i32
    return %arg0, %arg1, %c0_i32 : i32, i32, i32
  }
}

</mosaic_0001>

<llo_original>
// kernel: tpu_custom_call.1
$region0: #{tpu_custom_call.1}
  #allocation0 [shape = 'u32[]', space=smem, size = 0x4, offset = 0x4, fixed_abs, tag = 'smem constant byte address 0x4 - core index']
  #allocation1 [shape = 'u32[144,128]{1,0:T(1,128)}', space=vmem, size = 0x12000, scoped, tag = 'internal scratch']
  %s0 = inlined_call_operand.hbm [shape: f32[2,16,32], index: 0, kind: input, shape index: {}]
  %s1 = inlined_call_operand.hbm [shape: f32[32,128], index: 1, kind: input, shape index: {}]
  %s2 = inlined_call_operand.vmem [shape: f32[1,128], index: 2, kind: input, shape index: {}]
  %s3 = inlined_call_operand.hbm [shape: f32[2,16,128], index: 3, kind: output, shape index: {}]
  %s4 = sld [smem:[#allocation0]]
  $region53: #{tpu_custom_call.1} parent=0
    _
  %s6 = ssub.s32 1, %s4
  %s7 = scalar_select 0, %s6, %s4
  $region1: #{tpu_custom_call.1} parent=0
    #allocation2 [shape = 'u8[16384]{0}', space=vmem, size = 0x4000, scoped, tag = 'input window, operand 0']
    #allocation3 [shape = 's32[2]{0}', space=sflag, size = 0x8, scoped, tag = 'scoped memory for tpu_custom_call.1']
    #allocation4 [shape = 's32[2]{0}', space=sflag, size = 0x8, scoped, tag = 'scoped memory for tpu_custom_call.1']
    #allocation5 [shape = 'u8[16384]{0}', space=vmem, size = 0x4000, scoped, tag = 'input window, operand 1, single buffered']
    #allocation6 [shape = 's32[1]{0}', space=sflag, size = 0x4, scoped, tag = 'scoped memory for tpu_custom_call.1']
    #allocation7 [shape = 'u8[16384]{0}', space=vmem, size = 0x4000, scoped, tag = 'output window, operand 0']
    %8 = vsyncpa [#allocation3], 0
    %s9 = scalar_lea.sflag [#allocation3], 1
    %10 = vsyncpa %s9, 0
    %11 = vsyncpa [#allocation6], 0
    %12 = vsyncpa [#allocation4], 0
    %s13 = scalar_lea.sflag [#allocation4], 1
    %14 = vsyncpa %s13, 0
    loop: start=0, step=1, limit=4
    $region2: #{tpu_custom_call.1} parent=1 // loop_pre_header
      _
    $region3: #{tpu_custom_call.1} parent=1 // loop_header
      %s16 = sphi 0, %s20
      %p17 = scmp.ge.s32.totalorder %s16, 4
      %s23 = sphi 0, %s35
      %s24 = sphi 0, %s31
      %s25 = sphi 0, %s23
      %s26 = sphi 0, %s24
      %s27 = sphi 0, %s25
      %s28 = sphi 0, %s26
      %s40 = sphi 0, %s42
      %s43 = sphi 0, %s40
      %s44 = sphi 0, %s43
      %s60 = sphi 0, %s44
      %s64 = sphi 0, %s64
      %s66 = sphi 0, %s64
      %s67 = sphi 0, %s66
      %s81 = sphi 0, %s67
      %s85 = sphi 0, %s85
      %s87 = sphi 0, %s85
      %s88 = sphi 0, %s87
      %s102 = sphi 0, %s88
      %s110 = sphi 0, %s112
      %s113 = sphi 0, %s110
      %s114 = sphi 0, %s113
      %s130 = sphi 0, %s114
    $region4: #{tpu_custom_call.1} parent=1 // loop_header_branch
      %19 = sbr.rel (%p17) target = $region8
    $region5: #{tpu_custom_call.1} parent=1 // loop_body
      %s21 = ssub.s32 %s16, 1
      %s22 = ssub.s32 %s16, 2
      %s29 = sadd.s32 1, %s24
      %p30 = scmp.ge.s32.totalorder %s29, 1
      %s31 = scalar_select %p30, 0, %s29
      %s32 = sadd.s32 1, %s23
      %s33 = scalar_select %p30, %s32, %s23
      %p34 = scmp.ge.s32.totalorder %s33, 2
      %s35 = scalar_select %p34, 0, %s33
      %s36 = ssub.s32 %s23, %s35
      %s37 = ssub.s32 %s24, %s31
      %s38 = sor.u32 %s36, %s37
      %p39 = scmp.eq.s32.totalorder %s38, 0
      %s41 = sadd.s32 %s40, 1
      %s42 = scalar_select %p39, %s40, %s41
      %p45 = pneg %p39
      %p46 = scmp.eq.s32.totalorder %s16, 1
      %p47 = por %p45, %p46
      %p48 = scmp.ne.s32.totalorder %s40, %s43
      %p49 = scmp.eq.s32.totalorder %s16, 0
      %p50 = por %p48, %p49
      %p51 = scmp.ne.s32.totalorder %s40, %s43
      %p52 = scmp.eq.s32.totalorder %s21, 1
      %p53 = por %p51, %p52
      %p54 = scmp.ne.s32.totalorder %s43, %s44
      %p55 = scmp.eq.s32.totalorder %s21, 0
      %p56 = por %p54, %p55
      %p57 = scmp.ne.s32.totalorder %s43, %s44
      %p58 = scmp.eq.s32.totalorder %s22, 1
      %p59 = por %p57, %p58
      %p61 = scmp.ne.s32.totalorder %s44, %s60
      %p62 = scmp.eq.s32.totalorder %s22, 0
      %p63 = por %p61, %p62
      %s65 = sadd.s32 %s64, 1
      %p68 = scmp.eq.s32.totalorder %s16, 1
      %p69 = scmp.ne.s32.totalorder %s64, %s66
      %p70 = scmp.eq.s32.totalorder %s16, 0
      %p71 = por %p69, %p70
      %p72 = scmp.ne.s32.totalorder %s64, %s66
      %p73 = scmp.eq.s32.totalorder %s21, 1
      %p74 = por %p72, %p73
      %p75 = scmp.ne.s32.totalorder %s66, %s67
      %p76 = scmp.eq.s32.totalorder %s21, 0
      %p77 = por %p75, %p76
      %p78 = scmp.ne.s32.totalorder %s66, %s67
      %p79 = scmp.eq.s32.totalorder %s22, 1
      %p80 = por %p78, %p79
      %p82 = scmp.ne.s32.totalorder %s67, %s81
      %p83 = scmp.eq.s32.totalorder %s22, 0
      %p84 = por %p82, %p83
      %s86 = sadd.s32 %s85, 1
      %p89 = scmp.eq.s32.totalorder %s16, 1
      %p90 = scmp.ne.s32.totalorder %s85, %s87
      %p91 = scmp.eq.s32.totalorder %s16, 0
      %p92 = por %p90, %p91
      %p93 = scmp.ne.s32.totalorder %s85, %s87
      %p94 = scmp.eq.s32.totalorder %s21, 1
      %p95 = por %p93, %p94
      %p96 = scmp.ne.s32.totalorder %s87, %s88
      %p97 = scmp.eq.s32.totalorder %s21, 0
      %p98 = por %p96, %p97
      %p99 = scmp.ne.s32.totalorder %s87, %s88
      %p100 = scmp.eq.s32.totalorder %s22, 1
      %p101 = por %p99, %p100
      %p103 = scmp.ne.s32.totalorder %s88, %s102
      %p104 = scmp.eq.s32.totalorder %s22, 0
      %p105 = por %p103, %p104
      %s106 = ssub.s32 %s23, %s35
      %s107 = ssub.s32 %s24, %s31
      %s108 = sor.u32 %s106, %s107
      %p109 = scmp.eq.s32.totalorder %s108, 0
      %s111 = sadd.s32 %s110, 1
      %s112 = scalar_select %p109, %s110, %s111
      %p115 = pneg %p109
      %p116 = scmp.eq.s32.totalorder %s16, 1
      %p117 = por %p115, %p116
      %p118 = scmp.ne.s32.totalorder %s110, %s113
      %p119 = scmp.eq.s32.totalorder %s16, 0
      %p120 = por %p118, %p119
      %p121 = scmp.ne.s32.totalorder %s110, %s113
      %p122 = scmp.eq.s32.totalorder %s21, 1
      %p123 = por %p121, %p122
      %p124 = scmp.ne.s32.totalorder %s113, %s114
      %p125 = scmp.eq.s32.totalorder %s21, 0
      %p126 = por %p124, %p125
      %p127 = scmp.ne.s32.totalorder %s113, %s114
      %p128 = scmp.eq.s32.totalorder %s22, 1
      %p129 = por %p127, %p128
      %p131 = scmp.ne.s32.totalorder %s114, %s130
      %p132 = scmp.eq.s32.totalorder %s22, 0
      %p133 = por %p131, %p132
      %p134 = scmp.le.s32.totalorder 1, %s16
      %p135 = scmp.lt.s32.totalorder %s16, 3
      %p136 = pnand %p134, %p135
      %p137 = pneg %p136
      // Predicated region
      $region9: #{tpu_custom_call.1} parent=5 // pred_check
        _
      $region10: #{tpu_custom_call.1} parent=5 // pred_check_branch
        %139 = sbr.rel (%p136) target = $region12
      $region11: #{tpu_custom_call.1} parent=5 // pred_region
        %s140 = ssub.s32 %s16, 1
        // Predicated region
        $region13: #{tpu_custom_call.1} parent=11 // pred_check
          %p141 = pneg %p77
        $region14: #{tpu_custom_call.1} parent=11 // pred_check_branch
          %143 = sbr.rel (%p141) target = $region16
        $region15: #{tpu_custom_call.1} parent=11 // pred_region
          %s145 = ssub.s32 512, 512
          %146 = vsyncadd [#allocation6], %s145
          %s147 = sshll.u32 [#allocation5], 4
          %s148 = int_to_ptr.vmem [resolvable:$true] %s147
          %153 = dma.hbm_to_vmem [thread:$0]  %s1, 512, %s148, [#allocation6], 128, 128, 8
        $region16: #{tpu_custom_call.1} parent=11 // pred_fallthru
          _
        // Predicated region
        $region17: #{tpu_custom_call.1} parent=11 // pred_check
          %p154 = pneg %p98
        $region18: #{tpu_custom_call.1} parent=11 // pred_check_branch
          %156 = sbr.rel (%p154) target = $region20
        $region19: #{tpu_custom_call.1} parent=11 // pred_region
          _
        $region20: #{tpu_custom_call.1} parent=11 // pred_fallthru
          _
      $region12: #{tpu_custom_call.1} parent=5 // pred_fallthru
        _
      %p157 = scmp.lt.s32.totalorder %s16, 2
      // Predicated region
      $region21: #{tpu_custom_call.1} parent=5 // pred_check
        %p158 = pneg %p157
      $region22: #{tpu_custom_call.1} parent=5 // pred_check_branch
        %160 = sbr.rel (%p158) target = $region24
      $region23: #{tpu_custom_call.1} parent=5 // pred_region
        // Predicated region
        $region25: #{tpu_custom_call.1} parent=23 // pred_check
          %p161 = pneg %p50
        $region26: #{tpu_custom_call.1} parent=23 // pred_check_branch
          %163 = sbr.rel (%p161) target = $region28
        $region27: #{tpu_custom_call.1} parent=23 // pred_region
          %s164 = sand.u32 %s40, 1
          %s165 = scalar_lea.sflag [#allocation3], %s164
          %s166 = sand.u32 %s40, 1
          %s167 = smul.addr %s166, 16
          %s168 = scalar_lea.vmem [#allocation2], %s167
          %s169 = smul.u32 2, %s24
          %s171 = ssub.s32 256, 256
          %172 = vsyncadd %s165, %s171
          %s173 = smul.addr %s23, 2
          %s174 = sadd.s32 %s169, %s173
          %s175 = smul.addr %s174, 128
          %s176 = scalar_lea.hbm %s0, %s175
          %s177 = sshll.u32 %s168, 4
          %s178 = int_to_ptr.vmem [resolvable:$true] %s177
          %183 = dma.hbm_to_vmem [thread:$0]  %s176, 256, %s178, %s165, 128, 128, 8
        $region28: #{tpu_custom_call.1} parent=23 // pred_fallthru
          _
      $region24: #{tpu_custom_call.1} parent=5 // pred_fallthru
        _
      %p184 = scmp.le.s32.totalorder 1, %s16
      %p185 = scmp.lt.s32.totalorder %s16, 3
      %p186 = pnand %p184, %p185
      %p187 = pneg %p186
      // Predicated region
      $region29: #{tpu_custom_call.1} parent=5 // pred_check
        _
      $region30: #{tpu_custom_call.1} parent=5 // pred_check_branch
        %189 = sbr.rel (%p186) target = $region32
      $region31: #{tpu_custom_call.1} parent=5 // pred_region
        %s190 = ssub.s32 %s16, 1
        %s191 = sand.u32 %s43, 1
        %s192 = scalar_lea.sflag [#allocation3], %s191
        %s193 = sand.u32 %s43, 1
        %s194 = smul.addr %s193, 16
        %s195 = scalar_lea.vmem [#allocation2], %s194
        // Predicated region
        $region33: #{tpu_custom_call.1} parent=31 // pred_check
          %p196 = pneg %p56
        $region34: #{tpu_custom_call.1} parent=31 // pred_check_branch
          %198 = sbr.rel (%p196) target = $region36
        $region35: #{tpu_custom_call.1} parent=31 // pred_region
          %199 = dma.done %s192, 256
        $region36: #{tpu_custom_call.1} parent=31 // pred_fallthru
          _
        // Predicated region
        $region37: #{tpu_custom_call.1} parent=31 // pred_check
          %p200 = pneg %p77
        $region38: #{tpu_custom_call.1} parent=31 // pred_check_branch
          %202 = sbr.rel (%p200) target = $region40
        $region39: #{tpu_custom_call.1} parent=31 // pred_region
          %203 = dma.done [#allocation6], 512
        $region40: #{tpu_custom_call.1} parent=31 // pred_fallthru
          _
        %s204 = sand.u32 %s43, 1
        %s205 = scalar_lea.sflag [#allocation3], %s204
        %s206 = sand.u32 %s43, 1
        %s207 = smul.addr %s206, 16
        %s208 = scalar_lea.vmem [#allocation2], %s207
        %p209 = pneg %p56
        %p210 = pneg %p53
        %p211 = pneg %p77
        %p212 = pneg %p74
        %p213 = pneg %p98
        %p214 = pneg %p95
        %p215 = pneg %p126
        %p216 = pneg %p123
        %s217 = sand.u32 %s113, 1
        %s218 = scalar_lea.sflag [#allocation4], %s217
        %s219 = sand.u32 %s113, 1
        %s220 = smul.addr %s219, 16
        %s221 = scalar_lea.vmem [#allocation7], %s220
        %s222 = smul.u32 2, %s26
        %s223 = smul.u32 2, %s26
        %v224 = vld [vmem:[%s195] sm:$0xff]
        %v225 = vld [vmem:[%s195 + $0x8] sm:$0xff]
        %v226 = vld [vmem:[#allocation5] sm:$0xff]
        %v227 = vld [vmem:[#allocation5 + $0x8] sm:$0xff]
        %v228 = vld [vmem:[#allocation5 + $0x10] sm:$0xff]
        %v229 = vld [vmem:[#allocation5 + $0x18] sm:$0xff]
        %v230 = vld [vmem:[%s2] sm:$0x1]
        %v232 = vlaneseq
        %v233 = vshrl.u32 %v232, 7
        %v234 = vsub.s32 0, %v233
        %v235 = vrot.slane %v230, %v234
        %vm237 = vcmask 261120
        %v239 = vsel %vm237, %v224, 0
        %v242 = vsel %vm237, %v225, 0
        %244 = vmatprep.subr.mxu0 0.0
        %245 = vmatpush1.msra.mxu0 %v226
        %246 = vmatprep.subr.mxu0 0.0
        %247 = vmatpush1.msra.mxu0 %v227
        %248 = vmatprep.subr.mxu0 0.0
        %249 = vmatpush1.msra.mxu0 %v228
        %250 = vmatprep.subr.mxu0 0.0
        %251 = vmatpush1.msra.mxu0 %v229
        %252 = vmatprep.subr.mxu0 0.0
        %253 = vmatpush1.msra.mxu0 0.0
        %254 = vmatprep.subr.mxu0 0.0
        %255 = vmatpush1.msra.mxu0 0.0
        %256 = vmatprep.subr.mxu0 0.0
        %257 = vmatpush1.msra.mxu0 0.0
        %258 = vmatprep.subr.mxu0 0.0
        %259 = vmatpush1.msra.mxu0 0.0
        %260 = vmatprep.subr.mxu0 0.0
        %261 = vmatpush1.msra.mxu0 0.0
        %262 = vmatprep.subr.mxu0 0.0
        %263 = vmatpush1.msra.mxu0 0.0
        %264 = vmatprep.subr.mxu0 0.0
        %265 = vmatpush1.msra.mxu0 0.0
        %266 = vmatprep.subr.mxu0 0.0
        %267 = vmatpush1.msra.mxu0 0.0
        %268 = vmatprep.subr.mxu0 0.0
        %269 = vmatpush1.msra.mxu0 0.0
        %270 = vmatprep.subr.mxu0 0.0
        %271 = vmatpush1.msra.mxu0 0.0
        %272 = vmatprep.subr.mxu0 0.0
        %273 = vmatpush1.msra.mxu0 0.0
        %274 = vmatprep.subr.mxu0 0.0
        %275 = vmatpush1.msra.mxu0 0.0
        %276 = vmatprep.subr.mxu0 0.0
        %277 = vmatpush1.msra.mxu0 0.0
        %278 = vmatprep.subr.mxu0 0.0
        %279 = vmatpush1.msra.mxu0 0.0
        %280 = vmatprep.subr.mxu0 0.0
        %281 = vmatpush1.msra.mxu0 0.0
        %282 = vmatprep.subr.mxu0 0.0
        %283 = vmatpush1.msra.mxu0 0.0
        %284 = vmatprep.subr.mxu0 0.0
        %285 = vmatpush1.msra.mxu0 0.0
        %286 = vmatprep.subr.mxu0 0.0
        %287 = vmatpush1.msra.mxu0 0.0
        %288 = vmatprep.subr.mxu0 0.0
        %289 = vmatpush1.msra.mxu0 0.0
        %290 = vmatprep.subr.mxu0 0.0
        %291 = vmatpush1.msra.mxu0 0.0
        %292 = vmatprep.subr.mxu0 0.0
        %293 = vmatpush1.msra.mxu0 0.0
        %294 = vmatprep.subr.mxu0 0.0
        %295 = vmatpush1.msra.mxu0 0.0
        %296 = vmatprep.subr.mxu0 0.0
        %297 = vmatpush1.msra.mxu0 0.0
        %298 = vmatprep.subr.mxu0 0.0
        %299 = vmatpush1.msra.mxu0 0.0
        %300 = vmatprep.subr.mxu0 0.0
        %301 = vmatpush1.msra.mxu0 0.0
        %302 = vmatprep.subr.mxu0 0.0
        %303 = vmatpush1.msra.mxu0 0.0
        %304 = vmatprep.subr.mxu0 0.0
        %305 = vmatpush1.msra.mxu0 0.0
        %306 = vmatprep.subr.mxu0 0.0
        %307 = vmatpush1.msra.mxu0 0.0
        %308 = vmatprep.mubr.f32.mxu0 0.0
        %309 = vmatmul.mubr.f32.gmra.mrb[0].mxu0 %v239
        %v310 = vpop.f32.mrb[0].mxu0
        %v311 = vadd.f32 %v235, %v310
        %v312 = vpop.f32.mrb[0].mxu0
        %313 = vmatprep.mubr.f32.mxu0 0.0
        %314 = vmatmul.mubr.f32.gmra.mrb[0].mxu0 %v242
        %v315 = vpop.f32.mrb[0].mxu0
        %v316 = vadd.f32 %v235, %v315
        %v317 = vpop.f32.mrb[0].mxu0
        %318 = vdwg.mxu0
        %319 = vst [vmem:[%s221] sm:$0xff] %v311
        %320 = vst [vmem:[%s221 + $0x8] sm:$0xff] %v316
        %s321 = sand.u32 %s113, 1
        %s322 = scalar_lea.sflag [#allocation4], %s321
        %s323 = sand.u32 %s113, 1
        %s324 = smul.addr %s323, 16
        %s325 = scalar_lea.vmem [#allocation7], %s324
        // Predicated region
        $region41: #{tpu_custom_call.1} parent=31 // pred_check
          %p326 = pneg %p123
        $region42: #{tpu_custom_call.1} parent=31 // pred_check_branch
          %328 = sbr.rel (%p326) target = $region44
        $region43: #{tpu_custom_call.1} parent=31 // pred_region
          %s329 = smul.u32 2, %s26
          %s331 = ssub.s32 256, 256
          %332 = vsyncadd %s322, %s331
          %s333 = smul.addr %s25, 2
          %s334 = sadd.s32 %s329, %s333
          %s335 = smul.addr %s334, 128
          %s336 = scalar_lea.hbm %s3, %s335
          %s337 = sshll.u32 %s325, 4
          %s338 = int_to_ptr.vmem [resolvable:$true] %s337
          %343 = dma.vmem_to_hbm [thread:$0]  %s338, 256, %s336, %s322, 128, 128, 8
        $region44: #{tpu_custom_call.1} parent=31 // pred_fallthru
          _
      $region32: #{tpu_custom_call.1} parent=5 // pred_fallthru
        _
      %p344 = scmp.le.s32.totalorder 2, %s16
      // Predicated region
      $region45: #{tpu_custom_call.1} parent=5 // pred_check
        %p345 = pneg %p344
      $region46: #{tpu_custom_call.1} parent=5 // pred_check_branch
        %347 = sbr.rel (%p345) target = $region48
      $region47: #{tpu_custom_call.1} parent=5 // pred_region
        %s348 = ssub.s32 %s16, 2
        // Predicated region
        $region49: #{tpu_custom_call.1} parent=47 // pred_check
          %p349 = pneg %p129
        $region50: #{tpu_custom_call.1} parent=47 // pred_check_branch
          %351 = sbr.rel (%p349) target = $region52
        $region51: #{tpu_custom_call.1} parent=47 // pred_region
          %s352 = sand.u32 %s114, 1
          %s353 = scalar_lea.sflag [#allocation4], %s352
          %s354 = sand.u32 %s114, 1
          %s355 = smul.addr %s354, 16
          %s356 = scalar_lea.vmem [#allocation7], %s355
          %357 = dma.done %s353, 256
        $region52: #{tpu_custom_call.1} parent=47 // pred_fallthru
          _
      $region48: #{tpu_custom_call.1} parent=5 // pred_fallthru
        _
    $region6: #{tpu_custom_call.1} parent=1 // loop_footer
      %s20 = sadd.s32 1, %s16
    $region7: #{tpu_custom_call.1} parent=1 // loop_footer_branch
      %15 = sbr.rel target = $region3
    $region8: #{tpu_custom_call.1} parent=1 // loop_exit
      _
    %358 = vsyncpa [#allocation3], 1
    %s359 = scalar_lea.sflag [#allocation3], 1
    %360 = vsyncpa %s359, 1
    %361 = vsyncpa [#allocation6], 1
    %362 = vsyncpa [#allocation4], 1
    %s363 = scalar_lea.sflag [#allocation4], 1
    %364 = vsyncpa %s363, 1

</llo_original>
